<compile_context>
chip_gen: v5e
topology: v5e:2x2
jax: 0.10.0
libtpu: 0.0.40
codegen_flags: <defaults>
</compile_context>

<pallas_src>
from functools import partial

import jax
import jax.numpy as jnp
from jax import lax
from jax.experimental import pallas as pl
from jax.experimental.pallas import tpu as pltpu

LEAKY_SLOPE = 0.01
BN_EPS = 1e-5


def _recurrent_mlp_kernel(x_ref, wf_ref, bf_ref, wr_ref, gamma_ref, beta_ref,
                          wh_ref, bh_ref, out_ref, *, n_passes):
    # x_ref: (B, Cin) f32 for this grid step (one independent instance/batch).
    B = x_ref.shape[0]
    inv_b = jnp.float32(1.0 / B)

    # ---- first linear: bf16 operands on the MXU, f32 accumulation ----
    h = jnp.dot(x_ref[...].astype(jnp.bfloat16), wf_ref[...],
                preferred_element_type=jnp.float32)
    h = h + bf_ref[...]

    # ---- recurrent passes (shared linear, per-pass BatchNorm1d) ----
    wr = wr_ref[...]                       # bf16 recurrent weight, loaded once
    for p in range(n_passes):              # small static trip count -> unrolled
        z = jnp.dot(h.astype(jnp.bfloat16), wr,
                    preferred_element_type=jnp.float32)
        # leaky_relu (negative_slope = 0.01), f32
        z = jnp.where(z >= 0.0, z, LEAKY_SLOPE * z)
        # single-sweep batch statistics (biased variance, training-mode BN)
        s1 = jnp.sum(z, axis=0, keepdims=True)
        s2 = jnp.sum(z * z, axis=0, keepdims=True)
        mean = s1 * inv_b
        var = jnp.maximum(s2 * inv_b - mean * mean, 0.0)
        # fold BN affine into a single scale/shift
        scale = gamma_ref[p, :][None, :] * lax.rsqrt(var + BN_EPS)
        shift = beta_ref[p, :][None, :] - mean * scale
        h = z * scale + shift
        # dropout = 0 -> Identity (nothing to do)

    # ---- head linear ----
    y = jnp.dot(h.astype(jnp.bfloat16), wh_ref[...],
                preferred_element_type=jnp.float32)
    out_ref[...] = (y + bh_ref[...]).astype(out_ref.dtype)


def prepare_params(w_first, b_first, w_rec, gammas, betas, w_head, b_head):
    """One-time layout prep (hoisted out of the per-call hot path).

    PyTorch-convention (out, in) weights -> (in, out) bf16 matmul operands;
    biases -> (1, out) f32; BN affine params -> (n_passes, width) f32.
    """
    return dict(
        wf=jnp.asarray(w_first, jnp.float32).T.astype(jnp.bfloat16),
        bf=jnp.asarray(b_first, jnp.float32)[None, :],
        wr=jnp.asarray(w_rec, jnp.float32).T.astype(jnp.bfloat16),
        gammas=jnp.asarray(gammas, jnp.float32),
        betas=jnp.asarray(betas, jnp.float32),
        wh=jnp.asarray(w_head, jnp.float32).T.astype(jnp.bfloat16),
        bh=jnp.asarray(b_head, jnp.float32)[None, :],
    )


def recurrent_mlp_pallas(x, params, *, n_passes):
    """x: (B, Cin) for one batch, or (G, B, Cin) for G independent batches
    evaluated in a single pallas_call (grid over instances, "parallel").
    Returns (B, Cout) / (G, B, Cout) in f32."""
    squeeze = (x.ndim == 2)
    x = jnp.asarray(x, jnp.float32)
    if squeeze:
        x = x[None]
    G, B, c_in = x.shape
    width = params["wf"].shape[1]
    c_out = params["wh"].shape[1]

    def const_spec(arr):
        shp = arr.shape
        return pl.BlockSpec(shp, lambda g, _s=shp: (0,) * len(_s))

    cost = pl.CostEstimate(
        flops=2 * G * B * (c_in * width + n_passes * width * width + width * c_out),
        transcendentals=G * n_passes * width,           # rsqrt per BN channel
        bytes_accessed=int(
            x.size * 4
            + params["wf"].size * 2 + params["wr"].size * 2 + params["wh"].size * 2
            + params["bf"].size * 4 + params["bh"].size * 4
            + params["gammas"].size * 4 + params["betas"].size * 4
            + G * B * c_out * 4),
    )

    out = pl.pallas_call(
        partial(_recurrent_mlp_kernel, n_passes=n_passes),
        out_shape=jax.ShapeDtypeStruct((G, B, c_out), jnp.float32),
        grid=(G,),
        in_specs=[
            pl.BlockSpec((None, B, c_in), lambda g: (g, 0, 0)),   # per-instance x
            const_spec(params["wf"]),
            const_spec(params["bf"]),
            const_spec(params["wr"]),
            const_spec(params["gammas"]),
            const_spec(params["betas"]),
            const_spec(params["wh"]),
            const_spec(params["bh"]),
        ],
        out_specs=pl.BlockSpec((None, B, c_out), lambda g: (g, 0, 0)),
        compiler_params=pltpu.CompilerParams(
            dimension_semantics=("parallel",)),
        cost_estimate=cost,
    )(x, params["wf"], params["bf"], params["wr"], params["gammas"],
      params["betas"], params["wh"], params["bh"])

    return out[0] if squeeze else out


def recurrent_mlp_ref(x, w_first, b_first, w_rec, gammas, betas,
                      w_head, b_head, *, n_passes):
    """Pure-JAX f32 reference mirroring the PyTorch forward (training-mode BN)."""
    h = x @ w_first.T + b_first
    for p in range(n_passes):
        z = h @ w_rec.T
        z = jnp.where(z >= 0.0, z, LEAKY_SLOPE * z)
        mean = jnp.mean(z, axis=0, keepdims=True)
        var = jnp.mean((z - mean) ** 2, axis=0, keepdims=True)
        h = (z - mean) / jnp.sqrt(var + BN_EPS) * gammas[p] + betas[p]
    return h @ w_head.T + b_head


if __name__ == "__main__":
    # small shapes consistent with the module
    B, C_IN, WIDTH, C_OUT, N_PASSES = 8, 64, 128, 32, 3
    G = 4  # independent batches evaluated in one pallas_call (parallel grid)

    key = jax.random.PRNGKey(0)
    kx, k1, k2, k3, k4, k5, k6 = jax.random.split(key, 7)

    xg = jax.random.normal(kx, (G, B, C_IN), jnp.float32)

    # deterministic parameter init (synthetic, PyTorch-convention shapes)
    w_first = jax.random.normal(k1, (WIDTH, C_IN), jnp.float32) * (1.0 / jnp.sqrt(C_IN))
    b_first = jax.random.normal(k2, (WIDTH,), jnp.float32) * 0.01
    w_rec = jax.random.normal(k3, (WIDTH, WIDTH), jnp.float32) * (1.0 / jnp.sqrt(WIDTH))
    gammas = 1.0 + 0.1 * jax.random.normal(k4, (N_PASSES, WIDTH), jnp.float32)
    betas = 0.05 * jax.random.normal(k5, (N_PASSES, WIDTH), jnp.float32)
    w_head = jax.random.normal(k6, (C_OUT, WIDTH), jnp.float32) * (1.0 / jnp.sqrt(WIDTH))
    b_head = jnp.linspace(-0.1, 0.1, C_OUT, dtype=jnp.float32)

    # one-time parameter layout prep (NOT in the per-call hot path)
    params = jax.tree_util.tree_map(jax.block_until_ready,
                                    prepare_params(w_first, b_first, w_rec,
                                                   gammas, betas, w_head, b_head))

    # (a) single batch — matches the module forward exactly
    out1 = jax.block_until_ready(
        recurrent_mlp_pallas(xg[0], params, n_passes=N_PASSES))
    ref1 = recurrent_mlp_ref(xg[0], w_first, b_first, w_rec, gammas, betas,
                             w_head, b_head, n_passes=N_PASSES)
    assert out1.shape == (B, C_OUT)
    # tolerance loosened vs. the pure-f32 version: matmul operands are bf16
    assert bool(jnp.allclose(out1, ref1, atol=5e-2, rtol=5e-2)), "single-batch mismatch"

    # (b) G independent batches in one call (grid over instances, "parallel")
    outg = jax.block_until_ready(
        recurrent_mlp_pallas(xg, params, n_passes=N_PASSES))
    refg = jnp.stack([recurrent_mlp_ref(xg[g], w_first, b_first, w_rec, gammas,
                                        betas, w_head, b_head, n_passes=N_PASSES)
                      for g in range(G)])
    assert outg.shape == (G, B, C_OUT)
    assert bool(jnp.allclose(outg, refg, atol=5e-2, rtol=5e-2)), "grid mismatch"

    print("KERNEL_OK")
</pallas_src>

<mosaic_0001>
module attributes {stable_mosaic.version = 11 : i64} {
  func.func @_recurrent_mlp_kernel(%arg0: i32, %arg1: memref<1x8x64xf32, #tpu.memory_space<vmem>>, %arg2: memref<64x128xbf16, #tpu.memory_space<vmem>>, %arg3: memref<1x128xf32, #tpu.memory_space<vmem>>, %arg4: memref<128x128xbf16, #tpu.memory_space<vmem>>, %arg5: memref<3x128xf32, #tpu.memory_space<vmem>>, %arg6: memref<3x128xf32, #tpu.memory_space<vmem>>, %arg7: memref<128x32xbf16, #tpu.memory_space<vmem>>, %arg8: memref<1x32xf32, #tpu.memory_space<vmem>>, %arg9: memref<1x8x32xf32, #tpu.memory_space<vmem>>) attributes {dimension_semantics = [#tpu.dimension_semantics<parallel>], iteration_bounds = array<i64: 1>, scalar_prefetch = 0 : i64, scratch_operands = 0 : i64, tpu.core_type = #tpu.core_type<tc>, window_params = [{transform_indices = @transform_0, window_bounds = array<i64: 1, 8, 64>}, {pipeline_mode = #tpu.pipeline_mode<synchronous>, transform_indices = @transform_1, window_bounds = array<i64: 64, 128>}, {pipeline_mode = #tpu.pipeline_mode<synchronous>, transform_indices = @transform_2, window_bounds = array<i64: 1, 128>}, {pipeline_mode = #tpu.pipeline_mode<synchronous>, transform_indices = @transform_3, window_bounds = array<i64: 128, 128>}, {pipeline_mode = #tpu.pipeline_mode<synchronous>, transform_indices = @transform_4, window_bounds = array<i64: 3, 128>}, {pipeline_mode = #tpu.pipeline_mode<synchronous>, transform_indices = @transform_5, window_bounds = array<i64: 3, 128>}, {pipeline_mode = #tpu.pipeline_mode<synchronous>, transform_indices = @transform_6, window_bounds = array<i64: 128, 32>}, {pipeline_mode = #tpu.pipeline_mode<synchronous>, transform_indices = @transform_7, window_bounds = array<i64: 1, 32>}, {transform_indices = @transform_8, window_bounds = array<i64: 1, 8, 32>}]} {
    %c0 = arith.constant 0 : index
    %c0_0 = arith.constant 0 : index
    %c0_1 = arith.constant 0 : index
    %0 = vector.load %arg1[%c0, %c0_0, %c0_1] : memref<1x8x64xf32, #tpu.memory_space<vmem>>, vector<1x8x64xf32>
    %1 = vector.shape_cast %0 : vector<1x8x64xf32> to vector<8x64xf32>
    %2 = arith.truncf %1 : vector<8x64xf32> to vector<8x64xbf16>
    %c0_2 = arith.constant 0 : index
    %c0_3 = arith.constant 0 : index
    %3 = vector.load %arg2[%c0_2, %c0_3] : memref<64x128xbf16, #tpu.memory_space<vmem>>, vector<64x128xbf16>
    %cst = arith.constant dense<0.000000e+00> : vector<8x128xf32>
    %4 = tpu.matmul %2, %3, %cst {dimension_numbers = #tpu.dot_dimension_numbers<[1], [0], [0], [1], [0, 0, 1, 1], [], []>} : vector<8x64xbf16>, vector<64x128xbf16>, vector<8x128xf32> -> vector<8x128xf32>
    %c0_4 = arith.constant 0 : index
    %c0_5 = arith.constant 0 : index
    %5 = vector.load %arg3[%c0_4, %c0_5] : memref<1x128xf32, #tpu.memory_space<vmem>>, vector<1x128xf32>
    %6 = vector.broadcast %5 : vector<1x128xf32> to vector<8x128xf32>
    %7 = arith.addf %4, %6 : vector<8x128xf32>
    %c0_6 = arith.constant 0 : index
    %c0_7 = arith.constant 0 : index
    %8 = vector.load %arg4[%c0_6, %c0_7] : memref<128x128xbf16, #tpu.memory_space<vmem>>, vector<128x128xbf16>
    %9 = arith.truncf %7 : vector<8x128xf32> to vector<8x128xbf16>
    %cst_8 = arith.constant dense<0.000000e+00> : vector<8x128xf32>
    %10 = tpu.matmul %9, %8, %cst_8 {dimension_numbers = #tpu.dot_dimension_numbers<[1], [0], [0], [1], [0, 0, 1, 1], [], []>} : vector<8x128xbf16>, vector<128x128xbf16>, vector<8x128xf32> -> vector<8x128xf32>
    %cst_9 = arith.constant 0.000000e+00 : f32
    %11 = vector.broadcast %cst_9 : f32 to vector<8x128xf32>
    %12 = arith.cmpf oge, %10, %11 : vector<8x128xf32>
    %cst_10 = arith.constant 0.00999999977 : f32
    %13 = vector.broadcast %cst_10 : f32 to vector<8x128xf32>
    %14 = arith.mulf %13, %10 : vector<8x128xf32>
    %15 = arith.select %12, %10, %14 : vector<8x128xi1>, vector<8x128xf32>
    %cst_11 = arith.constant dense<0.000000e+00> : vector<128xf32>
    %16 = vector.multi_reduction <add>, %15, %cst_11 [0] : vector<8x128xf32> to vector<128xf32>
    %17 = vector.shape_cast %16 : vector<128xf32> to vector<1x128xf32>
    %18 = arith.mulf %15, %15 : vector<8x128xf32>
    %cst_12 = arith.constant dense<0.000000e+00> : vector<128xf32>
    %19 = vector.multi_reduction <add>, %18, %cst_12 [0] : vector<8x128xf32> to vector<128xf32>
    %20 = vector.shape_cast %19 : vector<128xf32> to vector<1x128xf32>
    %cst_13 = arith.constant 1.250000e-01 : f32
    %21 = vector.broadcast %cst_13 : f32 to vector<1x128xf32>
    %22 = arith.mulf %17, %21 : vector<1x128xf32>
    %cst_14 = arith.constant 1.250000e-01 : f32
    %23 = vector.broadcast %cst_14 : f32 to vector<1x128xf32>
    %24 = arith.mulf %20, %23 : vector<1x128xf32>
    %25 = arith.mulf %22, %22 : vector<1x128xf32>
    %26 = arith.subf %24, %25 : vector<1x128xf32>
    %cst_15 = arith.constant 0.000000e+00 : f32
    %27 = vector.broadcast %cst_15 : f32 to vector<1x128xf32>
    %28 = arith.maximumf %26, %27 : vector<1x128xf32>
    %c0_16 = arith.constant 0 : index
    %c0_17 = arith.constant 0 : index
    %29 = vector.load %arg5[%c0_16, %c0_17] : memref<3x128xf32, #tpu.memory_space<vmem>>, vector<1x128xf32>
    %30 = vector.shape_cast %29 : vector<1x128xf32> to vector<128xf32>
    %31 = vector.shape_cast %30 : vector<128xf32> to vector<1x128xf32>
    %cst_18 = arith.constant 9.99999974E-6 : f32
    %32 = vector.broadcast %cst_18 : f32 to vector<1x128xf32>
    %33 = arith.addf %28, %32 : vector<1x128xf32>
    %34 = math.rsqrt %33 : vector<1x128xf32>
    %35 = arith.mulf %31, %34 : vector<1x128xf32>
    %c0_19 = arith.constant 0 : index
    %c0_20 = arith.constant 0 : index
    %36 = vector.load %arg6[%c0_19, %c0_20] : memref<3x128xf32, #tpu.memory_space<vmem>>, vector<1x128xf32>
    %37 = vector.shape_cast %36 : vector<1x128xf32> to vector<128xf32>
    %38 = vector.shape_cast %37 : vector<128xf32> to vector<1x128xf32>
    %39 = arith.mulf %22, %35 : vector<1x128xf32>
    %40 = arith.subf %38, %39 : vector<1x128xf32>
    %41 = vector.broadcast %35 : vector<1x128xf32> to vector<8x128xf32>
    %42 = arith.mulf %15, %41 : vector<8x128xf32>
    %43 = vector.broadcast %40 : vector<1x128xf32> to vector<8x128xf32>
    %44 = arith.addf %42, %43 : vector<8x128xf32>
    %45 = arith.truncf %44 : vector<8x128xf32> to vector<8x128xbf16>
    %cst_21 = arith.constant dense<0.000000e+00> : vector<8x128xf32>
    %46 = tpu.matmul %45, %8, %cst_21 {dimension_numbers = #tpu.dot_dimension_numbers<[1], [0], [0], [1], [0, 0, 1, 1], [], []>} : vector<8x128xbf16>, vector<128x128xbf16>, vector<8x128xf32> -> vector<8x128xf32>
    %cst_22 = arith.constant 0.000000e+00 : f32
    %47 = vector.broadcast %cst_22 : f32 to vector<8x128xf32>
    %48 = arith.cmpf oge, %46, %47 : vector<8x128xf32>
    %cst_23 = arith.constant 0.00999999977 : f32
    %49 = vector.broadcast %cst_23 : f32 to vector<8x128xf32>
    %50 = arith.mulf %49, %46 : vector<8x128xf32>
    %51 = arith.select %48, %46, %50 : vector<8x128xi1>, vector<8x128xf32>
    %cst_24 = arith.constant dense<0.000000e+00> : vector<128xf32>
    %52 = vector.multi_reduction <add>, %51, %cst_24 [0] : vector<8x128xf32> to vector<128xf32>
    %53 = vector.shape_cast %52 : vector<128xf32> to vector<1x128xf32>
    %54 = arith.mulf %51, %51 : vector<8x128xf32>
    %cst_25 = arith.constant dense<0.000000e+00> : vector<128xf32>
    %55 = vector.multi_reduction <add>, %54, %cst_25 [0] : vector<8x128xf32> to vector<128xf32>
    %56 = vector.shape_cast %55 : vector<128xf32> to vector<1x128xf32>
    %cst_26 = arith.constant 1.250000e-01 : f32
    %57 = vector.broadcast %cst_26 : f32 to vector<1x128xf32>
    %58 = arith.mulf %53, %57 : vector<1x128xf32>
    %cst_27 = arith.constant 1.250000e-01 : f32
    %59 = vector.broadcast %cst_27 : f32 to vector<1x128xf32>
    %60 = arith.mulf %56, %59 : vector<1x128xf32>
    %61 = arith.mulf %58, %58 : vector<1x128xf32>
    %62 = arith.subf %60, %61 : vector<1x128xf32>
    %cst_28 = arith.constant 0.000000e+00 : f32
    %63 = vector.broadcast %cst_28 : f32 to vector<1x128xf32>
    %64 = arith.maximumf %62, %63 : vector<1x128xf32>
    %c1 = arith.constant 1 : index
    %c0_29 = arith.constant 0 : index
    %65 = vector.load %arg5[%c1, %c0_29] : memref<3x128xf32, #tpu.memory_space<vmem>>, vector<1x128xf32>
    %66 = vector.shape_cast %65 : vector<1x128xf32> to vector<128xf32>
    %67 = vector.shape_cast %66 : vector<128xf32> to vector<1x128xf32>
    %cst_30 = arith.constant 9.99999974E-6 : f32
    %68 = vector.broadcast %cst_30 : f32 to vector<1x128xf32>
    %69 = arith.addf %64, %68 : vector<1x128xf32>
    %70 = math.rsqrt %69 : vector<1x128xf32>
    %71 = arith.mulf %67, %70 : vector<1x128xf32>
    %c1_31 = arith.constant 1 : index
    %c0_32 = arith.constant 0 : index
    %72 = vector.load %arg6[%c1_31, %c0_32] : memref<3x128xf32, #tpu.memory_space<vmem>>, vector<1x128xf32>
    %73 = vector.shape_cast %72 : vector<1x128xf32> to vector<128xf32>
    %74 = vector.shape_cast %73 : vector<128xf32> to vector<1x128xf32>
    %75 = arith.mulf %58, %71 : vector<1x128xf32>
    %76 = arith.subf %74, %75 : vector<1x128xf32>
    %77 = vector.broadcast %71 : vector<1x128xf32> to vector<8x128xf32>
    %78 = arith.mulf %51, %77 : vector<8x128xf32>
    %79 = vector.broadcast %76 : vector<1x128xf32> to vector<8x128xf32>
    %80 = arith.addf %78, %79 : vector<8x128xf32>
    %81 = arith.truncf %80 : vector<8x128xf32> to vector<8x128xbf16>
    %cst_33 = arith.constant dense<0.000000e+00> : vector<8x128xf32>
    %82 = tpu.matmul %81, %8, %cst_33 {dimension_numbers = #tpu.dot_dimension_numbers<[1], [0], [0], [1], [0, 0, 1, 1], [], []>} : vector<8x128xbf16>, vector<128x128xbf16>, vector<8x128xf32> -> vector<8x128xf32>
    %cst_34 = arith.constant 0.000000e+00 : f32
    %83 = vector.broadcast %cst_34 : f32 to vector<8x128xf32>
    %84 = arith.cmpf oge, %82, %83 : vector<8x128xf32>
    %cst_35 = arith.constant 0.00999999977 : f32
    %85 = vector.broadcast %cst_35 : f32 to vector<8x128xf32>
    %86 = arith.mulf %85, %82 : vector<8x128xf32>
    %87 = arith.select %84, %82, %86 : vector<8x128xi1>, vector<8x128xf32>
    %cst_36 = arith.constant dense<0.000000e+00> : vector<128xf32>
    %88 = vector.multi_reduction <add>, %87, %cst_36 [0] : vector<8x128xf32> to vector<128xf32>
    %89 = vector.shape_cast %88 : vector<128xf32> to vector<1x128xf32>
    %90 = arith.mulf %87, %87 : vector<8x128xf32>
    %cst_37 = arith.constant dense<0.000000e+00> : vector<128xf32>
    %91 = vector.multi_reduction <add>, %90, %cst_37 [0] : vector<8x128xf32> to vector<128xf32>
    %92 = vector.shape_cast %91 : vector<128xf32> to vector<1x128xf32>
    %cst_38 = arith.constant 1.250000e-01 : f32
    %93 = vector.broadcast %cst_38 : f32 to vector<1x128xf32>
    %94 = arith.mulf %89, %93 : vector<1x128xf32>
    %cst_39 = arith.constant 1.250000e-01 : f32
    %95 = vector.broadcast %cst_39 : f32 to vector<1x128xf32>
    %96 = arith.mulf %92, %95 : vector<1x128xf32>
    %97 = arith.mulf %94, %94 : vector<1x128xf32>
    %98 = arith.subf %96, %97 : vector<1x128xf32>
    %cst_40 = arith.constant 0.000000e+00 : f32
    %99 = vector.broadcast %cst_40 : f32 to vector<1x128xf32>
    %100 = arith.maximumf %98, %99 : vector<1x128xf32>
    %c2 = arith.constant 2 : index
    %c0_41 = arith.constant 0 : index
    %101 = vector.load %arg5[%c2, %c0_41] : memref<3x128xf32, #tpu.memory_space<vmem>>, vector<1x128xf32>
    %102 = vector.shape_cast %101 : vector<1x128xf32> to vector<128xf32>
    %103 = vector.shape_cast %102 : vector<128xf32> to vector<1x128xf32>
    %cst_42 = arith.constant 9.99999974E-6 : f32
    %104 = vector.broadcast %cst_42 : f32 to vector<1x128xf32>
    %105 = arith.addf %100, %104 : vector<1x128xf32>
    %106 = math.rsqrt %105 : vector<1x128xf32>
    %107 = arith.mulf %103, %106 : vector<1x128xf32>
    %c2_43 = arith.constant 2 : index
    %c0_44 = arith.constant 0 : index
    %108 = vector.load %arg6[%c2_43, %c0_44] : memref<3x128xf32, #tpu.memory_space<vmem>>, vector<1x128xf32>
    %109 = vector.shape_cast %108 : vector<1x128xf32> to vector<128xf32>
    %110 = vector.shape_cast %109 : vector<128xf32> to vector<1x128xf32>
    %111 = arith.mulf %94, %107 : vector<1x128xf32>
    %112 = arith.subf %110, %111 : vector<1x128xf32>
    %113 = vector.broadcast %107 : vector<1x128xf32> to vector<8x128xf32>
    %114 = arith.mulf %87, %113 : vector<8x128xf32>
    %115 = vector.broadcast %112 : vector<1x128xf32> to vector<8x128xf32>
    %116 = arith.addf %114, %115 : vector<8x128xf32>
    %117 = arith.truncf %116 : vector<8x128xf32> to vector<8x128xbf16>
    %c0_45 = arith.constant 0 : index
    %c0_46 = arith.constant 0 : index
    %118 = vector.load %arg7[%c0_45, %c0_46] : memref<128x32xbf16, #tpu.memory_space<vmem>>, vector<128x32xbf16>
    %cst_47 = arith.constant dense<0.000000e+00> : vector<8x32xf32>
    %119 = tpu.matmul %117, %118, %cst_47 {dimension_numbers = #tpu.dot_dimension_numbers<[1], [0], [0], [1], [0, 0, 1, 1], [], []>} : vector<8x128xbf16>, vector<128x32xbf16>, vector<8x32xf32> -> vector<8x32xf32>
    %c0_48 = arith.constant 0 : index
    %c0_49 = arith.constant 0 : index
    %120 = vector.load %arg8[%c0_48, %c0_49] : memref<1x32xf32, #tpu.memory_space<vmem>>, vector<1x32xf32>
    %121 = vector.broadcast %120 : vector<1x32xf32> to vector<8x32xf32>
    %122 = arith.addf %119, %121 : vector<8x32xf32>
    %c0_50 = arith.constant 0 : index
    %c0_51 = arith.constant 0 : index
    %c0_52 = arith.constant 0 : index
    %123 = vector.load %arg9[%c0_50, %c0_51, %c0_52] : memref<1x8x32xf32, #tpu.memory_space<vmem>>, vector<1x8x32xf32>
    %124 = vector.shape_cast %123 : vector<1x8x32xf32> to vector<8x32xf32>
    %125 = vector.shape_cast %122 : vector<8x32xf32> to vector<1x8x32xf32>
    tpu.vector_store %arg9[%c0_50, %c0_51, %c0_52], %125 {strides = array<i32>} : memref<1x8x32xf32, #tpu.memory_space<vmem>>, vector<1x8x32xf32>,
    return
  }
  func.func @transform_0(%arg0: i32) -> (i32, i32, i32) {
    %c0_i32 = arith.constant 0 : i32
    %c0_i32_0 = arith.constant 0 : i32
    %c0_i32_1 = arith.constant 0 : i32
    return %arg0, %c0_i32, %c0_i32_0 : i32, i32, i32
  }
  func.func @transform_1(%arg0: i32) -> (i32, i32) {
    %c0_i32 = arith.constant 0 : i32
    %c0_i32_0 = arith.constant 0 : i32
    %c0_i32_1 = arith.constant 0 : i32
    return %c0_i32, %c0_i32_0 : i32, i32
  }
  func.func @transform_2(%arg0: i32) -> (i32, i32) {
    %c0_i32 = arith.constant 0 : i32
    %c0_i32_0 = arith.constant 0 : i32
    %c0_i32_1 = arith.constant 0 : i32
    return %c0_i32, %c0_i32_0 : i32, i32
  }
  func.func @transform_3(%arg0: i32) -> (i32, i32) {
    %c0_i32 = arith.constant 0 : i32
    %c0_i32_0 = arith.constant 0 : i32
    %c0_i32_1 = arith.constant 0 : i32
    return %c0_i32, %c0_i32_0 : i32, i32
  }
  func.func @transform_4(%arg0: i32) -> (i32, i32) {
    %c0_i32 = arith.constant 0 : i32
    %c0_i32_0 = arith.constant 0 : i32
    %c0_i32_1 = arith.constant 0 : i32
    return %c0_i32, %c0_i32_0 : i32, i32
  }
  func.func @transform_5(%arg0: i32) -> (i32, i32) {
    %c0_i32 = arith.constant 0 : i32
    %c0_i32_0 = arith.constant 0 : i32
    %c0_i32_1 = arith.constant 0 : i32
    return %c0_i32, %c0_i32_0 : i32, i32
  }
  func.func @transform_6(%arg0: i32) -> (i32, i32) {
    %c0_i32 = arith.constant 0 : i32
    %c0_i32_0 = arith.constant 0 : i32
    %c0_i32_1 = arith.constant 0 : i32
    return %c0_i32, %c0_i32_0 : i32, i32
  }
  func.func @transform_7(%arg0: i32) -> (i32, i32) {
    %c0_i32 = arith.constant 0 : i32
    %c0_i32_0 = arith.constant 0 : i32
    %c0_i32_1 = arith.constant 0 : i32
    return %c0_i32, %c0_i32_0 : i32, i32
  }
  func.func @transform_8(%arg0: i32) -> (i32, i32, i32) {
    %c0_i32 = arith.constant 0 : i32
    %c0_i32_0 = arith.constant 0 : i32
    %c0_i32_1 = arith.constant 0 : i32
    return %arg0, %c0_i32, %c0_i32_0 : i32, i32, i32
  }
}

</mosaic_0001>

<llo_original>
// kernel: tpu_custom_call.1
$region0: #{tpu_custom_call.1}
  #allocation0 [shape = 'u32[]', space=smem, size = 0x4, offset = 0x4, fixed_abs, tag = 'smem constant byte address 0x4 - core index']
  #allocation1 [shape = 'u32[72,128]{1,0:T(1,128)}', space=vmem, size = 0x9000, scoped, tag = 'internal scratch']
  %s0 = inlined_call_operand.vmem [shape: f32[1,8,64], index: 0, kind: input, shape index: {}]
  %s1 = inlined_call_operand.hbm [shape: bf16[64,128], index: 1, kind: input, shape index: {}]
  %s2 = inlined_call_operand.vmem [shape: f32[1,128], index: 2, kind: input, shape index: {}]
  %s3 = inlined_call_operand.vmem [shape: bf16[128,128], index: 3, kind: input, shape index: {}]
  %s4 = inlined_call_operand.vmem [shape: f32[3,128], index: 4, kind: input, shape index: {}]
  %s5 = inlined_call_operand.vmem [shape: f32[3,128], index: 5, kind: input, shape index: {}]
  %s6 = inlined_call_operand.vmem [shape: bf16[128,32], index: 6, kind: input, shape index: {}]
  %s7 = inlined_call_operand.vmem [shape: f32[1,32], index: 7, kind: input, shape index: {}]
  %s8 = inlined_call_operand.hbm [shape: f32[1,8,32], index: 8, kind: output, shape index: {}]
  %s9 = sld [smem:[#allocation0]]
  $region46: #{tpu_custom_call.1} parent=0
    _
  %s11 = ssub.s32 1, %s9
  %s12 = scalar_select 0, %s11, %s9
  $region1: #{tpu_custom_call.1} parent=0
    #allocation2 [shape = 'u8[16384]{0}', space=vmem, size = 0x4000, scoped, tag = 'input window, operand 1, single buffered']
    #allocation3 [shape = 's32[1]{0}', space=sflag, size = 0x4, scoped, tag = 'scoped memory for tpu_custom_call.1']
    #allocation4 [shape = 's32[1]{0}', space=sflag, size = 0x4, scoped, tag = 'scoped memory for tpu_custom_call.1']
    #allocation5 [shape = 'u8[4096]{0}', space=vmem, size = 0x1000, scoped, tag = 'output window, operand 0, single buffered']
    %13 = vsyncpa [#allocation3], 0
    %14 = vsyncpa [#allocation4], 0
    // Predicated region
    $region2: #{tpu_custom_call.1} parent=1 // pred_check
      _
    $region3: #{tpu_custom_call.1} parent=1 // pred_check_branch
      %16 = sbr.rel (0) target = $region5
    $region4: #{tpu_custom_call.1} parent=1 // pred_region
      _
    $region5: #{tpu_custom_call.1} parent=1 // pred_fallthru
      _
    // Predicated region
    $region6: #{tpu_custom_call.1} parent=1 // pred_check
      _
    $region7: #{tpu_custom_call.1} parent=1 // pred_check_branch
      %18 = sbr.rel (0) target = $region9
    $region8: #{tpu_custom_call.1} parent=1 // pred_region
      %20 = vsyncadd [#allocation3], 0
      %s21 = sshll.u32 %s1, 4
      %s22 = int_to_ptr.hbm [resolvable:$true] %s21
      %s23 = sshll.u32 [#allocation2], 4
      %s24 = int_to_ptr.vmem [resolvable:$true] %s23
      %29 = dma.hbm_to_vmem [thread:$0]  %s22, 512, %s24, [#allocation3], 64, 64, 4
    $region9: #{tpu_custom_call.1} parent=1 // pred_fallthru
      _
    // Predicated region
    $region10: #{tpu_custom_call.1} parent=1 // pred_check
      _
    $region11: #{tpu_custom_call.1} parent=1 // pred_check_branch
      %31 = sbr.rel (0) target = $region13
    $region12: #{tpu_custom_call.1} parent=1 // pred_region
      _
    $region13: #{tpu_custom_call.1} parent=1 // pred_fallthru
      _
    // Predicated region
    $region14: #{tpu_custom_call.1} parent=1 // pred_check
      _
    $region15: #{tpu_custom_call.1} parent=1 // pred_check_branch
      %33 = sbr.rel (0) target = $region17
    $region16: #{tpu_custom_call.1} parent=1 // pred_region
      _
    $region17: #{tpu_custom_call.1} parent=1 // pred_fallthru
      _
    // Predicated region
    $region18: #{tpu_custom_call.1} parent=1 // pred_check
      _
    $region19: #{tpu_custom_call.1} parent=1 // pred_check_branch
      %35 = sbr.rel (0) target = $region21
    $region20: #{tpu_custom_call.1} parent=1 // pred_region
      _
    $region21: #{tpu_custom_call.1} parent=1 // pred_fallthru
      _
    // Predicated region
    $region22: #{tpu_custom_call.1} parent=1 // pred_check
      _
    $region23: #{tpu_custom_call.1} parent=1 // pred_check_branch
      %37 = sbr.rel (0) target = $region25
    $region24: #{tpu_custom_call.1} parent=1 // pred_region
      _
    $region25: #{tpu_custom_call.1} parent=1 // pred_fallthru
      _
    // Predicated region
    $region26: #{tpu_custom_call.1} parent=1 // pred_check
      _
    $region27: #{tpu_custom_call.1} parent=1 // pred_check_branch
      %39 = sbr.rel (0) target = $region29
    $region28: #{tpu_custom_call.1} parent=1 // pred_region
      _
    $region29: #{tpu_custom_call.1} parent=1 // pred_fallthru
      _
    // Predicated region
    $region30: #{tpu_custom_call.1} parent=1 // pred_check
      _
    $region31: #{tpu_custom_call.1} parent=1 // pred_check_branch
      %41 = sbr.rel (0) target = $region33
    $region32: #{tpu_custom_call.1} parent=1 // pred_region
      _
    $region33: #{tpu_custom_call.1} parent=1 // pred_fallthru
      _
    // Predicated region
    $region34: #{tpu_custom_call.1} parent=1 // pred_check
      _
    $region35: #{tpu_custom_call.1} parent=1 // pred_check_branch
      %43 = sbr.rel (0) target = $region37
    $region36: #{tpu_custom_call.1} parent=1 // pred_region
      %45 = dma.done [#allocation3], 512
    $region37: #{tpu_custom_call.1} parent=1 // pred_fallthru
      _
    %v47 = vld [vmem:[%s0] sm:$0xff]
    %v48 = vpack.c.bf16 %v47, %v47
    %v49 = vld [vmem:[#allocation2] sm:$0xf]
    %v50 = vld [vmem:[#allocation2 + $0x4] sm:$0xf]
    %v51 = vld [vmem:[#allocation2 + $0x8] sm:$0xf]
    %v52 = vld [vmem:[#allocation2 + $0xc] sm:$0xf]
    %v53 = vld [vmem:[#allocation2 + $0x10] sm:$0xf]
    %v54 = vld [vmem:[#allocation2 + $0x14] sm:$0xf]
    %v55 = vld [vmem:[#allocation2 + $0x18] sm:$0xf]
    %v56 = vld [vmem:[#allocation2 + $0x1c] sm:$0xf]
    %v57 = vld [vmem:[%s2] sm:$0x1]
    %v59 = vperm.slane %v57, 0
    %v69 = vunpack.c.l.b16 %v49
    %v70 = vunpack.c.l.b16 %v50
    %v71 = vunpack.c.l.b16 %v51
    %v72 = vunpack.c.l.b16 %v52
    %v73 = vunpack.c.l.b16 %v53
    %v74 = vunpack.c.l.b16 %v54
    %v75 = vunpack.c.l.b16 %v55
    %v76 = vunpack.c.l.b16 %v56
    %v77 = vpack.c.b16 %v70, %v69
    %v78 = vpack.c.b16 %v72, %v71
    %v79 = vpack.c.b16 %v74, %v73
    %v80 = vpack.c.b16 %v76, %v75
    %vm85 = vcmask 523264
    %v87 = vsel %vm85, %v48, 0
    %89 = vmatpush.bf16.msra.mxu0 0
    %90 = vmatpush.bf16.msra.mxu0 0
    %91 = vmatpush.bf16.msra.mxu0 0
    %92 = vmatpush.bf16.msra.mxu0 0
    %93 = vmatpush.bf16.msra.mxu0 %v80
    %94 = vmatpush.bf16.msra.mxu0 %v79
    %95 = vmatpush.bf16.msra.mxu0 %v78
    %96 = vmatpush.bf16.msra.mxu0 %v77
    %97 = vmatmul.bf16.gmra.mxu0 %v87
    %v98 = vpop.f32.mrf.mxu0
    %v99 = vadd.f32 %v59, %v98
    %v100 = vpop.f32.mrf.mxu0
    %101 = vdwg.mxu0
    %v102 = vld [vmem:[%s3] sm:$0xf]
    %v103 = vld [vmem:[%s3 + $0x4] sm:$0xf]
    %v104 = vld [vmem:[%s3 + $0x8] sm:$0xf]
    %v105 = vld [vmem:[%s3 + $0xc] sm:$0xf]
    %v106 = vld [vmem:[%s3 + $0x10] sm:$0xf]
    %v107 = vld [vmem:[%s3 + $0x14] sm:$0xf]
    %v108 = vld [vmem:[%s3 + $0x18] sm:$0xf]
    %v109 = vld [vmem:[%s3 + $0x1c] sm:$0xf]
    %v110 = vld [vmem:[%s3 + $0x20] sm:$0xf]
    %v111 = vld [vmem:[%s3 + $0x24] sm:$0xf]
    %v112 = vld [vmem:[%s3 + $0x28] sm:$0xf]
    %v113 = vld [vmem:[%s3 + $0x2c] sm:$0xf]
    %v114 = vld [vmem:[%s3 + $0x30] sm:$0xf]
    %v115 = vld [vmem:[%s3 + $0x34] sm:$0xf]
    %v116 = vld [vmem:[%s3 + $0x38] sm:$0xf]
    %v117 = vld [vmem:[%s3 + $0x3c] sm:$0xf]
    %v118 = vpack.c.bf16 %v99, %v99
    %v135 = vunpack.c.l.b16 %v102
    %v136 = vunpack.c.l.b16 %v103
    %v137 = vunpack.c.l.b16 %v104
    %v138 = vunpack.c.l.b16 %v105
    %v139 = vunpack.c.l.b16 %v106
    %v140 = vunpack.c.l.b16 %v107
    %v141 = vunpack.c.l.b16 %v108
    %v142 = vunpack.c.l.b16 %v109
    %v143 = vunpack.c.l.b16 %v110
    %v144 = vunpack.c.l.b16 %v111
    %v145 = vunpack.c.l.b16 %v112
    %v146 = vunpack.c.l.b16 %v113
    %v147 = vunpack.c.l.b16 %v114
    %v148 = vunpack.c.l.b16 %v115
    %v149 = vunpack.c.l.b16 %v116
    %v150 = vunpack.c.l.b16 %v117
    %v151 = vpack.c.b16 %v136, %v135
    %v152 = vpack.c.b16 %v138, %v137
    %v153 = vpack.c.b16 %v140, %v139
    %v154 = vpack.c.b16 %v142, %v141
    %v155 = vpack.c.b16 %v144, %v143
    %v156 = vpack.c.b16 %v146, %v145
    %v157 = vpack.c.b16 %v148, %v147
    %v158 = vpack.c.b16 %v150, %v149
    %167 = vmatpush.bf16.msra.mxu0 %v158
    %168 = vmatpush.bf16.msra.mxu0 %v157
    %169 = vmatpush.bf16.msra.mxu0 %v156
    %170 = vmatpush.bf16.msra.mxu0 %v155
    %171 = vmatpush.bf16.msra.mxu0 %v154
    %172 = vmatpush.bf16.msra.mxu0 %v153
    %173 = vmatpush.bf16.msra.mxu0 %v152
    %174 = vmatpush.bf16.msra.mxu0 %v151
    %175 = vmatmul.bf16.gmra.mxu0 %v118
    %v176 = vpop.f32.mrf.mxu0
    %v177 = vadd.f32 0.0, %v176
    %v178 = vpop.f32.mrf.mxu0
    %179 = vdwg.mxu0
    %vm180 = vcmp.ge.f32.partialorder %v177, 0.0
    %v181 = vmul.f32 %v177, 0.01
    %v182 = vsel %vm180, %v177, %v181
    %v183 = vrot.slane %v182, 4
    %v184 = vadd.f32 %v182, %v183
    %v185 = vrot.slane %v184, 2
    %v186 = vadd.f32 %v184, %v185
    %v187 = vrot.slane %v186, 1
    %v188 = vadd.f32 %v186, %v187
    %v189 = vmul.f32 %v182, %v182
    %v190 = vrot.slane %v189, 4
    %v191 = vadd.f32 %v189, %v190
    %v192 = vrot.slane %v191, 2
    %v193 = vadd.f32 %v191, %v192
    %v194 = vrot.slane %v193, 1
    %v195 = vadd.f32 %v193, %v194
    %v196 = vmul.f32 %v188, 0.125
    %v197 = vmul.f32 %v195, 0.125
    %v198 = vmul.f32 %v196, %v196
    %v199 = vsub.f32 %v197, %v198
    %v200 = vmax.f32 %v199, 0.0
    %v201 = vld [vmem:[%s4] sm:$0x1]
    %v202 = vadd.f32 %v200, 1e-05
    %v203 = vrsqrt.pop %v202
    %v204 = vmul.f32 %v203, %v202
    %v205 = vmul.f32 %v204, %v203
    %v206 = vmul.f32 0.5, %v205
    %v207 = vsub.f32 1.5, %v206
    %v208 = vmul.f32 %v203, %v207
    %vm209 = vweird.f32 %v202
    %vm210 = vweird.f32 %v203
    %vm211 = vmor %vm209, %vm210
    %v212 = vsel %vm211, %v203, %v208
    %v213 = vmul.f32 %v201, %v212
    %v214 = vld [vmem:[%s5] sm:$0x1]
    %v215 = vmul.f32 %v196, %v213
    %v216 = vsub.f32 %v214, %v215
    %v217 = vperm.slane %v213, 0
    %v218 = vmul.f32 %v182, %v217
    %v219 = vperm.slane %v216, 0
    %v220 = vadd.f32 %v218, %v219
    %v221 = vpack.c.bf16 %v220, %v220
    %222 = vmatpush.bf16.msra.mxu0 %v158
    %223 = vmatpush.bf16.msra.mxu0 %v157
    %224 = vmatpush.bf16.msra.mxu0 %v156
    %225 = vmatpush.bf16.msra.mxu0 %v155
    %226 = vmatpush.bf16.msra.mxu0 %v154
    %227 = vmatpush.bf16.msra.mxu0 %v153
    %228 = vmatpush.bf16.msra.mxu0 %v152
    %229 = vmatpush.bf16.msra.mxu0 %v151
    %230 = vmatmul.bf16.gmra.mxu0 %v221
    %v231 = vpop.f32.mrf.mxu0
    %v232 = vadd.f32 0.0, %v231
    %v233 = vpop.f32.mrf.mxu0
    %234 = vdwg.mxu0
    %vm235 = vcmp.ge.f32.partialorder %v232, 0.0
    %v236 = vmul.f32 %v232, 0.01
    %v237 = vsel %vm235, %v232, %v236
    %v238 = vrot.slane %v237, 4
    %v239 = vadd.f32 %v237, %v238
    %v240 = vrot.slane %v239, 2
    %v241 = vadd.f32 %v239, %v240
    %v242 = vrot.slane %v241, 1
    %v243 = vadd.f32 %v241, %v242
    %v244 = vmul.f32 %v237, %v237
    %v245 = vrot.slane %v244, 4
    %v246 = vadd.f32 %v244, %v245
    %v247 = vrot.slane %v246, 2
    %v248 = vadd.f32 %v246, %v247
    %v249 = vrot.slane %v248, 1
    %v250 = vadd.f32 %v248, %v249
    %v251 = vmul.f32 %v243, 0.125
    %v252 = vmul.f32 %v250, 0.125
    %v253 = vmul.f32 %v251, %v251
    %v254 = vsub.f32 %v252, %v253
    %v255 = vmax.f32 %v254, 0.0
    %v256 = vld [vmem:[%s4 + $0x1] sm:$0x1]
    %v257 = vadd.f32 %v255, 1e-05
    %v258 = vrsqrt.pop %v257
    %v259 = vmul.f32 %v258, %v257
    %v260 = vmul.f32 %v259, %v258
    %v261 = vmul.f32 0.5, %v260
    %v262 = vsub.f32 1.5, %v261
    %v263 = vmul.f32 %v258, %v262
    %vm264 = vweird.f32 %v257
    %vm265 = vweird.f32 %v258
    %vm266 = vmor %vm264, %vm265
    %v267 = vsel %vm266, %v258, %v263
    %v268 = vmul.f32 %v256, %v267
    %v269 = vld [vmem:[%s5 + $0x1] sm:$0x1]
    %v270 = vmul.f32 %v251, %v268
    %v271 = vsub.f32 %v269, %v270
    %v272 = vperm.slane %v268, 0
    %v273 = vmul.f32 %v237, %v272
    %v274 = vperm.slane %v271, 0
    %v275 = vadd.f32 %v273, %v274
    %v276 = vpack.c.bf16 %v275, %v275
    %277 = vmatpush.bf16.msra.mxu0 %v158
    %278 = vmatpush.bf16.msra.mxu0 %v157
    %279 = vmatpush.bf16.msra.mxu0 %v156
    %280 = vmatpush.bf16.msra.mxu0 %v155
    %281 = vmatpush.bf16.msra.mxu0 %v154
    %282 = vmatpush.bf16.msra.mxu0 %v153
    %283 = vmatpush.bf16.msra.mxu0 %v152
    %284 = vmatpush.bf16.msra.mxu0 %v151
    %285 = vmatmul.bf16.gmra.mxu0 %v276
    %v286 = vpop.f32.mrf.mxu0
    %v287 = vadd.f32 0.0, %v286
    %v288 = vpop.f32.mrf.mxu0
    %289 = vdwg.mxu0
    %vm290 = vcmp.ge.f32.partialorder %v287, 0.0
    %v291 = vmul.f32 %v287, 0.01
    %v292 = vsel %vm290, %v287, %v291
    %v293 = vrot.slane %v292, 4
    %v294 = vadd.f32 %v292, %v293
    %v295 = vrot.slane %v294, 2
    %v296 = vadd.f32 %v294, %v295
    %v297 = vrot.slane %v296, 1
    %v298 = vadd.f32 %v296, %v297
    %v299 = vmul.f32 %v292, %v292
    %v300 = vrot.slane %v299, 4
    %v301 = vadd.f32 %v299, %v300
    %v302 = vrot.slane %v301, 2
    %v303 = vadd.f32 %v301, %v302
    %v304 = vrot.slane %v303, 1
    %v305 = vadd.f32 %v303, %v304
    %v306 = vmul.f32 %v298, 0.125
    %v307 = vmul.f32 %v305, 0.125
    %v308 = vmul.f32 %v306, %v306
    %v309 = vsub.f32 %v307, %v308
    %v310 = vmax.f32 %v309, 0.0
    %v311 = vld [vmem:[%s4 + $0x2] sm:$0x1]
    %v312 = vadd.f32 %v310, 1e-05
    %v313 = vrsqrt.pop %v312
    %v314 = vmul.f32 %v313, %v312
    %v315 = vmul.f32 %v314, %v313
    %v316 = vmul.f32 0.5, %v315
    %v317 = vsub.f32 1.5, %v316
    %v318 = vmul.f32 %v313, %v317
    %vm319 = vweird.f32 %v312
    %vm320 = vweird.f32 %v313
    %vm321 = vmor %vm319, %vm320
    %v322 = vsel %vm321, %v313, %v318
    %v323 = vmul.f32 %v311, %v322
    %v324 = vld [vmem:[%s5 + $0x2] sm:$0x1]
    %v325 = vmul.f32 %v306, %v323
    %v326 = vsub.f32 %v324, %v325
    %v327 = vperm.slane %v323, 0
    %v328 = vmul.f32 %v292, %v327
    %v329 = vperm.slane %v326, 0
    %v330 = vadd.f32 %v328, %v329
    %v331 = vpack.c.bf16 %v330, %v330
    %v332 = vld [vmem:[%s6] sm:$0xf]
    %v333 = vld [vmem:[%s6 + $0x4] sm:$0xf]
    %v334 = vld [vmem:[%s6 + $0x8] sm:$0xf]
    %v335 = vld [vmem:[%s6 + $0xc] sm:$0xf]
    %v336 = vld [vmem:[%s6 + $0x10] sm:$0xf]
    %v337 = vld [vmem:[%s6 + $0x14] sm:$0xf]
    %v338 = vld [vmem:[%s6 + $0x18] sm:$0xf]
    %v339 = vld [vmem:[%s6 + $0x1c] sm:$0xf]
    %v340 = vld [vmem:[%s6 + $0x20] sm:$0xf]
    %v341 = vld [vmem:[%s6 + $0x24] sm:$0xf]
    %v342 = vld [vmem:[%s6 + $0x28] sm:$0xf]
    %v343 = vld [vmem:[%s6 + $0x2c] sm:$0xf]
    %v344 = vld [vmem:[%s6 + $0x30] sm:$0xf]
    %v345 = vld [vmem:[%s6 + $0x34] sm:$0xf]
    %v346 = vld [vmem:[%s6 + $0x38] sm:$0xf]
    %v347 = vld [vmem:[%s6 + $0x3c] sm:$0xf]
    %v348 = vld [vmem:[%s7] sm:$0x1]
    %v350 = vperm.slane %v348, 0
    %v368 = vunpack.c.l.b16 %v332
    %v369 = vunpack.c.l.b16 %v333
    %v370 = vunpack.c.l.b16 %v334
    %v371 = vunpack.c.l.b16 %v335
    %v372 = vunpack.c.l.b16 %v336
    %v373 = vunpack.c.l.b16 %v337
    %v374 = vunpack.c.l.b16 %v338
    %v375 = vunpack.c.l.b16 %v339
    %v376 = vunpack.c.l.b16 %v340
    %v377 = vunpack.c.l.b16 %v341
    %v378 = vunpack.c.l.b16 %v342
    %v379 = vunpack.c.l.b16 %v343
    %v380 = vunpack.c.l.b16 %v344
    %v381 = vunpack.c.l.b16 %v345
    %v382 = vunpack.c.l.b16 %v346
    %v383 = vunpack.c.l.b16 %v347
    %v384 = vpack.c.b16 %v369, %v368
    %v385 = vpack.c.b16 %v371, %v370
    %v386 = vpack.c.b16 %v373, %v372
    %v387 = vpack.c.b16 %v375, %v374
    %v388 = vpack.c.b16 %v377, %v376
    %v389 = vpack.c.b16 %v379, %v378
    %v390 = vpack.c.b16 %v381, %v380
    %v391 = vpack.c.b16 %v383, %v382
    %400 = vmatpush.bf16.msra.mxu0 %v391
    %401 = vmatpush.bf16.msra.mxu0 %v390
    %402 = vmatpush.bf16.msra.mxu0 %v389
    %403 = vmatpush.bf16.msra.mxu0 %v388
    %404 = vmatpush.bf16.msra.mxu0 %v387
    %405 = vmatpush.bf16.msra.mxu0 %v386
    %406 = vmatpush.bf16.msra.mxu0 %v385
    %407 = vmatpush.bf16.msra.mxu0 %v384
    %408 = vmatmul.bf16.gmra.mxu0 %v331
    %v409 = vpop.f32.mrf.mxu0
    %v410 = vadd.f32 %v350, %v409
    %v411 = vpop.f32.mrf.mxu0
    %412 = vdwg.mxu0
    %vm413 = vcmask 261120
    %414 = vst.msk [vmem:[#allocation5] sm:$0xff] %vm413, %v410
    // Predicated region
    $region38: #{tpu_custom_call.1} parent=1 // pred_check
      _
    $region39: #{tpu_custom_call.1} parent=1 // pred_check_branch
      %416 = sbr.rel (0) target = $region41
    $region40: #{tpu_custom_call.1} parent=1 // pred_region
      %418 = vsyncadd [#allocation4], 0
      %s420 = sshll.u32 [#allocation5], 4
      %s421 = int_to_ptr.vmem [resolvable:$true] %s420
      %s422 = sshll.u32 %s8, 4
      %s423 = int_to_ptr.hbm [resolvable:$true] %s422
      %425 = dma.vmem_to_hbm [thread:$0]  %s421, 128, %s423, [#allocation4]
    $region41: #{tpu_custom_call.1} parent=1 // pred_fallthru
      _
    // Predicated region
    $region42: #{tpu_custom_call.1} parent=1 // pred_check
      _
    $region43: #{tpu_custom_call.1} parent=1 // pred_check_branch
      %427 = sbr.rel (0) target = $region45
    $region44: #{tpu_custom_call.1} parent=1 // pred_region
      %429 = dma.done [#allocation4], 128
    $region45: #{tpu_custom_call.1} parent=1 // pred_fallthru
      _
    %430 = vsyncpa [#allocation3], 1
    %431 = vsyncpa [#allocation4], 1

</llo_original>
